<compile_context>
chip_gen: v7x
topology: tpu7x:2x2x1
jax: 0.10.0
libtpu: 0.0.40
codegen_flags: <defaults>
</compile_context>

<pallas_src>
import functools
import math

import jax
import jax.numpy as jnp
from jax import lax
from jax.experimental import pallas as pl
from jax.experimental.pallas import tpu as pltpu


def _round_up(x: int, m: int) -> int:
    return ((x + m - 1) // m) * m


# --------------------------------------------------------------------------
# Small-shape path: one block, no grid.  x:(B,K) w:(N,K) b:(1,N) -> o:(B,N)
# --------------------------------------------------------------------------
def _small_linear_kernel(x_ref, w_ref, b_ref, o_ref):
    o_ref[...] = (
        lax.dot_general(
            x_ref[...], w_ref[...],
            dimension_numbers=(((1,), (1,)), ((), ())),   # contract in_f on both
            preferred_element_type=jnp.float32,
        )
        + b_ref[...]
    ).astype(o_ref.dtype)


# --------------------------------------------------------------------------
# Tiled path, f32 output: accumulate directly into the resident output block.
# --------------------------------------------------------------------------
def _tiled_kernel_f32out(x_ref, w_ref, b_ref, o_ref):
    k = pl.program_id(2)

    @pl.when(k == 0)
    def _():
        o_ref[...] = jnp.zeros_like(o_ref)

    o_ref[...] += lax.dot_general(
        x_ref[...], w_ref[...],
        dimension_numbers=(((1,), (1,)), ((), ())),
        preferred_element_type=jnp.float32,
    )

    @pl.when(k == pl.num_programs(2) - 1)
    def _():
        o_ref[...] += b_ref[...]


# --------------------------------------------------------------------------
# Tiled path, non-f32 output: f32 VMEM accumulator + cast in the epilogue.
# --------------------------------------------------------------------------
def _tiled_kernel_acc(x_ref, w_ref, b_ref, o_ref, acc_ref):
    k = pl.program_id(2)

    @pl.when(k == 0)
    def _():
        acc_ref[...] = jnp.zeros_like(acc_ref)

    acc_ref[...] += lax.dot_general(
        x_ref[...], w_ref[...],
        dimension_numbers=(((1,), (1,)), ((), ())),
        preferred_element_type=jnp.float32,
    )

    @pl.when(k == pl.num_programs(2) - 1)
    def _():
        o_ref[...] = (acc_ref[...] + b_ref[...]).astype(o_ref.dtype)


@functools.partial(jax.jit,
                   static_argnames=("tm", "tn", "tk", "cast_inputs_to_bf16"))
def fused_linear_add(x, weight, bias, other, *,
                     tm=None, tn=None, tk=None, cast_inputs_to_bf16=False):
    """Forward of the PyTorch module: (x @ weight.T + bias) + other.

    x: (B, in_f); weight: (out_f, in_f) [PyTorch layout]; bias: (out_f,);
    other: (1, out_f).  Returns (B, out_f) in x.dtype.
    """
    B, K = x.shape
    N, Kw = weight.shape
    assert K == Kw
    out_dtype = x.dtype

    # Fold bias + other into one broadcast row (one fewer input stream).
    badd = (bias.reshape(1, N).astype(jnp.float32)
            + other.reshape(1, N).astype(jnp.float32))

    # ---------------- small-shape fast path (the actual model shape) --------
    total_bytes = 4 * (B * K + N * K + B * N + N)
    if total_bytes <= (4 << 20):
        return pl.pallas_call(
            _small_linear_kernel,
            out_shape=jax.ShapeDtypeStruct((B, N), out_dtype),
        )(x, weight, badd)

    # ---------------- tiled path for real sizes -----------------------------
    if cast_inputs_to_bf16:
        x = x.astype(jnp.bfloat16)
        weight = weight.astype(jnp.bfloat16)

    if tm is None:
        tm = min(_round_up(B, 8), 512)
    if tn is None:
        tn = min(_round_up(N, 128), 1024)
    if tk is None:
        tk = min(_round_up(K, 128), 1024)

    Mp, Np, Kp = _round_up(B, tm), _round_up(N, tn), _round_up(K, tk)

    # Zero padding is a no-op when the true shapes already divide the tiles.
    xp = x if (Mp == B and Kp == K) else jnp.pad(x, ((0, Mp - B), (0, Kp - K)))
    wp = weight if (Np == N and Kp == K) else jnp.pad(
        weight, ((0, Np - N), (0, Kp - K)))
    bp = badd if Np == N else jnp.pad(badd, ((0, 0), (0, Np - N)))

    grid = (Mp // tm, Np // tn, Kp // tk)
    elt = jnp.dtype(xp.dtype).itemsize
    use_direct = (out_dtype == jnp.float32)

    # Double-buffered input tiles + output (+ optional scratch) + slack,
    # capped so v7x's 64 MiB physical VMEM is never overcommitted.
    need = 2 * (tm * tk * elt + tn * tk * elt + tn * 4) + 2 * (tm * tn * 4)
    if not use_direct:
        need += tm * tn * 4
    vmem_limit = int(min(max(need + (8 << 20), 24 << 20), 48 << 20))

    in_specs = [
        pl.BlockSpec((tm, tk), lambda i, j, k: (i, k)),
        pl.BlockSpec((tn, tk), lambda i, j, k: (j, k)),
        pl.BlockSpec((1, tn), lambda i, j, k: (0, j)),   # re-fetched only per j
    ]
    out_spec = pl.BlockSpec((tm, tn), lambda i, j, k: (i, j))

    out_p = pl.pallas_call(
        _tiled_kernel_f32out if use_direct else _tiled_kernel_acc,
        out_shape=jax.ShapeDtypeStruct((Mp, Np), out_dtype),
        grid_spec=pltpu.PrefetchScalarGridSpec(
            num_scalar_prefetch=0,
            grid=grid,
            in_specs=in_specs,
            out_specs=out_spec,
            scratch_shapes=([] if use_direct
                            else [pltpu.VMEM((tm, tn), jnp.float32)]),
        ),
        compiler_params=pltpu.CompilerParams(
            dimension_semantics=("parallel", "parallel", "arbitrary"),
            vmem_limit_bytes=vmem_limit,
        ),
    )(xp, wp, bp)

    if Mp == B and Np == N:
        return out_p
    return out_p[:B, :N]


if __name__ == "__main__":
    key = jax.random.PRNGKey(0)
    k_w, k_b, k_x, k_o = jax.random.split(key, 4)

    # ---- the module's actual shapes: Linear(3, 6), batch 1 ----------------
    in_features, out_features, batch = 3, 6, 1
    bound = 1.0 / math.sqrt(in_features)
    weight = jax.random.uniform(k_w, (out_features, in_features),
                                minval=-bound, maxval=bound, dtype=jnp.float32)
    bias = jax.random.uniform(k_b, (out_features,),
                              minval=-bound, maxval=bound, dtype=jnp.float32)
    x2 = jax.random.normal(k_x, (batch, in_features), dtype=jnp.float32)
    other = jax.random.normal(k_o, (1, out_features), dtype=jnp.float32)

    out = fused_linear_add(x2, weight, bias, other)
    out = jax.block_until_ready(out)

    ref = x2 @ weight.T + bias + other
    assert out.shape == (batch, out_features)
    assert jnp.allclose(out, ref, atol=1e-5, rtol=1e-5)

    # ---- exercise the tiled (real-size) path once as a self-check ---------
    kb_x, kb_w, kb_b, kb_o = jax.random.split(jax.random.PRNGKey(1), 4)
    Bb, Kb, Nb = 256, 2048, 512
    xb = jax.random.normal(kb_x, (Bb, Kb), dtype=jnp.float32)
    wb = jax.random.normal(kb_w, (Nb, Kb), dtype=jnp.float32) / math.sqrt(Kb)
    bb = jax.random.normal(kb_b, (Nb,), dtype=jnp.float32)
    ob = jax.random.normal(kb_o, (1, Nb), dtype=jnp.float32)

    out_big = jax.block_until_ready(fused_linear_add(xb, wb, bb, ob))
    ref_big = lax.dot_general(
        xb, wb, dimension_numbers=(((1,), (1,)), ((), ())),
        precision=lax.Precision.HIGHEST) + bb + ob
    assert out_big.shape == (Bb, Nb)
    assert jnp.allclose(out_big, ref_big, atol=1e-2, rtol=2e-3)

    print("KERNEL_OK")
</pallas_src>

<mosaic_0001>
module attributes {stable_mosaic.version = 11 : i64} {
  func.func @_small_linear_kernel(%arg0: memref<1x3xf32, #tpu.memory_space<vmem>>, %arg1: memref<6x3xf32, #tpu.memory_space<vmem>>, %arg2: memref<1x6xf32, #tpu.memory_space<vmem>>, %arg3: memref<1x6xf32, #tpu.memory_space<vmem>>) attributes {dimension_semantics = [], scalar_prefetch = 0 : i64, scratch_operands = 0 : i64, tpu.core_type = #tpu.core_type<tc>} {
    %c0 = arith.constant 0 : index
    %c0_0 = arith.constant 0 : index
    %0 = vector.load %arg0[%c0, %c0_0] : memref<1x3xf32, #tpu.memory_space<vmem>>, vector<1x3xf32>
    %c0_1 = arith.constant 0 : index
    %c0_2 = arith.constant 0 : index
    %1 = vector.load %arg1[%c0_1, %c0_2] : memref<6x3xf32, #tpu.memory_space<vmem>>, vector<6x3xf32>
    %cst = arith.constant dense<0.000000e+00> : vector<1x6xf32>
    %2 = tpu.matmul %0, %1, %cst {dimension_numbers = #tpu.dot_dimension_numbers<[1], [1], [0], [0], [0, 0, 1, 0], [], []>} : vector<1x3xf32>, vector<6x3xf32>, vector<1x6xf32> -> vector<1x6xf32>
    %c0_3 = arith.constant 0 : index
    %c0_4 = arith.constant 0 : index
    %3 = vector.load %arg2[%c0_3, %c0_4] : memref<1x6xf32, #tpu.memory_space<vmem>>, vector<1x6xf32>
    %4 = arith.addf %2, %3 : vector<1x6xf32>
    %c0_5 = arith.constant 0 : index
    %c0_6 = arith.constant 0 : index
    %5 = vector.load %arg3[%c0_5, %c0_6] : memref<1x6xf32, #tpu.memory_space<vmem>>, vector<1x6xf32>
    tpu.vector_store %arg3[%c0_5, %c0_6], %4 {strides = array<i32>} : memref<1x6xf32, #tpu.memory_space<vmem>>, vector<1x6xf32>,
    return
  }
}

</mosaic_0001>

<llo_original>
// kernel: fused_linear_add.1
$region0: #{fused_linear_add.1}
  #allocation0 [shape = 'u32[]', space=smem, size = 0x4, offset = 0x4, fixed_abs, tag = 'smem constant byte address 0x4 - core index']
  #allocation1 [shape = 'u32[144,128]{1,0:T(1,128)}', space=vmem, size = 0x12000, scoped, tag = 'internal scratch']
  %s0 = inlined_call_operand.vmem [shape: f32[1,3], index: 0, kind: input, shape index: {}]
  %s1 = inlined_call_operand.vmem [shape: f32[6,3], index: 1, kind: input, shape index: {}]
  %s2 = inlined_call_operand.vmem [shape: f32[1,6], index: 2, kind: input, shape index: {}]
  %s3 = inlined_call_operand.hbm [shape: f32[1,6], index: 3, kind: output, shape index: {}]
  %s4 = sld [smem:[#allocation0]]
  $region22: #{fused_linear_add.1} parent=0
    _
  %s6 = ssub.s32 1, %s4
  %s7 = scalar_select 0, %s6, %s4
  $region1: #{fused_linear_add.1} parent=0
    #allocation2 [shape = 'u8[512]{0}', space=vmem, size = 0x400, scoped, tag = 'output window, operand 0, single buffered']
    #allocation3 [shape = 's32[1]{0}', space=sflag, size = 0x4, scoped, tag = 'scoped memory for fused_linear_add.1']
    %8 = vsyncpa [#allocation3], 0
    // Predicated region
    $region2: #{fused_linear_add.1} parent=1 // pred_check
      _
    $region3: #{fused_linear_add.1} parent=1 // pred_check_branch
      %10 = sbr.rel (0) target = $region5
    $region4: #{fused_linear_add.1} parent=1 // pred_region
      _
    $region5: #{fused_linear_add.1} parent=1 // pred_fallthru
      _
    // Predicated region
    $region6: #{fused_linear_add.1} parent=1 // pred_check
      _
    $region7: #{fused_linear_add.1} parent=1 // pred_check_branch
      %12 = sbr.rel (0) target = $region9
    $region8: #{fused_linear_add.1} parent=1 // pred_region
      _
    $region9: #{fused_linear_add.1} parent=1 // pred_fallthru
      _
    // Predicated region
    $region10: #{fused_linear_add.1} parent=1 // pred_check
      _
    $region11: #{fused_linear_add.1} parent=1 // pred_check_branch
      %14 = sbr.rel (0) target = $region13
    $region12: #{fused_linear_add.1} parent=1 // pred_region
      _
    $region13: #{fused_linear_add.1} parent=1 // pred_fallthru
      _
    %v15 = vld [vmem:[%s0] sm:$0x1]
    %v16 = vld [vmem:[%s1] sm:$0x3f]
    %v17 = vld [vmem:[%s2] sm:$0x1]
    %vm18 = vcmask 23552
    %v20 = vsel %vm18, %v15, 0
    %v23 = vsel %vm18, %v16, 0
    %25 = vmatprep.subr.mxu0 0.0
    %26 = vmatpush1.xpose.msra.mxu0 %v23
    %27 = vmatprep.subr.mxu0 0.0
    %28 = vmatpush1.xpose.msra.mxu0 0.0
    %29 = vmatprep.subr.mxu0 0.0
    %30 = vmatpush1.xpose.msra.mxu0 0.0
    %31 = vmatprep.subr.mxu0 0.0
    %32 = vmatpush1.xpose.msra.mxu0 0.0
    %33 = vmatprep.subr.mxu0 0.0
    %34 = vmatpush1.xpose.msra.mxu0 0.0
    %35 = vmatprep.subr.mxu0 0.0
    %36 = vmatpush1.xpose.msra.mxu0 0.0
    %37 = vmatprep.subr.mxu0 0.0
    %38 = vmatpush1.xpose.msra.mxu0 0.0
    %39 = vmatprep.subr.mxu0 0.0
    %40 = vmatpush1.xpose.msra.mxu0 0.0
    %41 = vmatprep.subr.mxu0 0.0
    %42 = vmatpush1.xpose.msra.mxu0 0.0
    %43 = vmatprep.subr.mxu0 0.0
    %44 = vmatpush1.xpose.msra.mxu0 0.0
    %45 = vmatprep.subr.mxu0 0.0
    %46 = vmatpush1.xpose.msra.mxu0 0.0
    %47 = vmatprep.subr.mxu0 0.0
    %48 = vmatpush1.xpose.msra.mxu0 0.0
    %49 = vmatprep.subr.mxu0 0.0
    %50 = vmatpush1.xpose.msra.mxu0 0.0
    %51 = vmatprep.subr.mxu0 0.0
    %52 = vmatpush1.xpose.msra.mxu0 0.0
    %53 = vmatprep.subr.mxu0 0.0
    %54 = vmatpush1.xpose.msra.mxu0 0.0
    %55 = vmatprep.subr.mxu0 0.0
    %56 = vmatpush1.xpose.msra.mxu0 0.0
    %57 = vmatprep.subr.mxu0 0.0
    %58 = vmatpush1.xpose.msra.mxu0 0.0
    %59 = vmatprep.subr.mxu0 0.0
    %60 = vmatpush1.xpose.msra.mxu0 0.0
    %61 = vmatprep.subr.mxu0 0.0
    %62 = vmatpush1.xpose.msra.mxu0 0.0
    %63 = vmatprep.subr.mxu0 0.0
    %64 = vmatpush1.xpose.msra.mxu0 0.0
    %65 = vmatprep.subr.mxu0 0.0
    %66 = vmatpush1.xpose.msra.mxu0 0.0
    %67 = vmatprep.subr.mxu0 0.0
    %68 = vmatpush1.xpose.msra.mxu0 0.0
    %69 = vmatprep.subr.mxu0 0.0
    %70 = vmatpush1.xpose.msra.mxu0 0.0
    %71 = vmatprep.subr.mxu0 0.0
    %72 = vmatpush1.xpose.msra.mxu0 0.0
    %73 = vmatprep.subr.mxu0 0.0
    %74 = vmatpush1.xpose.msra.mxu0 0.0
    %75 = vmatprep.subr.mxu0 0.0
    %76 = vmatpush1.xpose.msra.mxu0 0.0
    %77 = vmatprep.subr.mxu0 0.0
    %78 = vmatpush1.xpose.msra.mxu0 0.0
    %79 = vmatprep.subr.mxu0 0.0
    %80 = vmatpush1.xpose.msra.mxu0 0.0
    %81 = vmatprep.subr.mxu0 0.0
    %82 = vmatpush1.xpose.msra.mxu0 0.0
    %83 = vmatprep.subr.mxu0 0.0
    %84 = vmatpush1.xpose.msra.mxu0 0.0
    %85 = vmatprep.subr.mxu0 0.0
    %86 = vmatpush1.xpose.msra.mxu0 0.0
    %87 = vmatprep.subr.mxu0 0.0
    %88 = vmatpush1.xpose.msra.mxu0 0.0
    %89 = vmatprep.mubr.f32.mxu0 0.0
    %90 = vmatmul.mubr.f32.gmra.mrb[0].mxu0 %v20
    %v91 = vpop.f32.mrb[0].mxu0
    %v92 = vadd.f32 %v17, %v91
    %v93 = vpop.f32.mrb[0].mxu0
    %94 = vdwg.mxu0
    %vm95 = vcmask 40960
    %96 = vst.msk [vmem:[#allocation2] sm:$0x1] %vm95, %v92
    // Predicated region
    $region14: #{fused_linear_add.1} parent=1 // pred_check
      _
    $region15: #{fused_linear_add.1} parent=1 // pred_check_branch
      %98 = sbr.rel (0) target = $region17
    $region16: #{fused_linear_add.1} parent=1 // pred_region
      %s100 = ssub.s32 16, 16
      %101 = vsyncadd [#allocation3], %s100
      %s103 = sshll.u32 [#allocation2], 4
      %s104 = int_to_ptr.vmem [resolvable:$true] %s103
      %106 = dma.vmem_to_hbm [thread:$0]  %s104, 16, %s3, [#allocation3]
    $region17: #{fused_linear_add.1} parent=1 // pred_fallthru
      _
    // Predicated region
    $region18: #{fused_linear_add.1} parent=1 // pred_check
      _
    $region19: #{fused_linear_add.1} parent=1 // pred_check_branch
      %108 = sbr.rel (0) target = $region21
    $region20: #{fused_linear_add.1} parent=1 // pred_region
      %109 = dma.done [#allocation3], 16
    $region21: #{fused_linear_add.1} parent=1 // pred_fallthru
      _
    %110 = vsyncpa [#allocation3], 1

</llo_original>
